<compile_context>
chip_gen: v5e
topology: v5e:2x2
jax: 0.10.0
libtpu: 0.0.40
codegen_flags: <defaults>
</compile_context>

<pallas_src>
import functools
import math

import numpy as np

import jax
import jax.numpy as jnp
from jax.experimental import pallas as pl
from jax.experimental.pallas import tpu as pltpu


def _round_up(x, m):
    return (x + m - 1) // m * m


def _pick_row_tile(b):
    """Largest row tile whose sublane dim is a multiple of 8 (or the full B)."""
    for t in (32, 16, 8):
        if b % t == 0:
            return t
    return b


def _trailing_window_sum(v, k):
    """t[..., p] = sum_{j=0}^{k-1} v[..., p-j]  (circular along the last axis).

    Binary roll+add tree: ~log2(k) pltpu.roll ops (XLU) + adds (VPU), exact f32.
    """
    axis = v.ndim - 1
    memo = {1: v}

    def build(w):
        if w in memo:
            return memo[w]
        lo = w // 2
        hi = w - lo
        res = build(lo) + pltpu.roll(build(hi), lo, axis=axis)
        memo[w] = res
        return res

    return build(k)


def _loss_kernel(xy_ref, a_ref, ind_ref, w_ref, out_ref, *scratch,
                 k, nv, m_pad, fused_gather):
    """One batch-row tile of the loss.

    xy_ref : (2, tb, nv)    fused   -- raw x/y channels (gather done in-kernel)
             (2, tb, m_pad) fallback -- pre-gathered x/y channels
    a_ref  : (tb, m_pad)    A in its native (Nv*K)-flattened lane layout
    ind_ref: (1, m_pad)     int32 gather indices (unused in fallback mode)
    w_ref  : (1, m_pad)     static keep-weights (segment-end lanes of kept rows)
    out_ref: (1, 8, 128)    this tile's partial sum, broadcast over the block
    """
    tb = a_ref.shape[0]
    a = a_ref[...]
    w = w_ref[...]
    total = jnp.zeros((), dtype=jnp.float32)

    if fused_gather:
        (src_scratch,) = scratch
        idx = jnp.broadcast_to(ind_ref[...], (tb, m_pad))
        # Stage the (tb, nv) channel into a (tb, m_pad)-wide VMEM buffer so the
        # gather source and indices have identical shapes (take_along_axis
        # form).  Lanes >= nv are never indexed (indices are < nv).
        src_scratch[...] = jnp.zeros_like(src_scratch)
        # TODO(synk): for very large Nv*K (multi-vreg lane gathers) this single
        # dynamic_gather may need chunking; fine at the shapes used here.

    for c in range(2):                       # x channel, then y channel
        if fused_gather:
            src_scratch[:, 0:nv] = xy_ref[c]
            g = jnp.take_along_axis(src_scratch[...], idx, axis=1,
                                    mode="promise_in_bounds")
        else:
            g = xy_ref[c]                    # already gathered in the wrapper
        prod = a * g                                           # (tb, m_pad)
        t = _trailing_window_sum(prod, k)    # segment sums land at lanes i*K+K-1
        total = total + jnp.sum(w * jnp.abs(t))

    out_ref[...] = jnp.full(out_ref.shape, total, dtype=jnp.float32)


@functools.partial(jax.jit, static_argnames=("bound_num", "fused_gather"))
def _loss_impl(pred, A, org_ind, *, bound_num, fused_gather):
    B, two, Nv = pred.shape
    assert two == 2, "pred must be (batch, 2, Nv)"
    K = A.shape[2]
    assert A.shape[0] == B and A.shape[1] == Nv
    assert Nv > 1
    bound_row = math.floor(bound_num / 2)
    assert 0 <= bound_row < Nv, "bound_num // 2 must index a valid row of A"

    M = Nv * K
    M_pad = _round_up(M, 128)

    # --- A: streamed exactly once, native layout (free reshape). -----------
    a_flat = jnp.asarray(A, jnp.float32).reshape(B, M)
    if M_pad != M:
        # Only taken when Nv*K is not 128-aligned (costs one extra copy of A).
        a_flat = jnp.pad(a_flat, ((0, 0), (0, M_pad - M)))

    # --- pred: tiny; channel-major so the kernel can index x / y directly. -
    xy = jnp.asarray(pred, jnp.float32).transpose(1, 0, 2)        # (2, B, Nv)

    # --- gather indices (clamped, jnp.take semantics) + static keep mask. --
    ind = jnp.clip(jnp.asarray(org_ind, jnp.int32).reshape(-1), 0, Nv - 1)
    if M_pad != M:
        ind = jnp.pad(ind, (0, M_pad - M))
    ind2d = ind.reshape(1, M_pad)

    lanes = np.arange(M_pad)
    seg = lanes // K
    keep = ((lanes % K == K - 1) & (seg >= 1) & (seg < Nv) & (seg != bound_row))
    w2d = jnp.asarray(keep.reshape(1, M_pad).astype(np.float32))

    tb = _pick_row_tile(B)
    nb = B // tb

    if fused_gather:
        xy_in = xy
        xy_spec = pl.BlockSpec((2, tb, Nv), lambda ib: (0, ib, 0))
        scratch_shapes = [pltpu.VMEM((tb, M_pad), jnp.float32)]
    else:
        # Fallback: hoist the gather to XLA (materializes (2, B, M_pad)).
        xy_in = jnp.take(xy, ind, axis=2)
        xy_spec = pl.BlockSpec((2, tb, M_pad), lambda ib: (0, ib, 0))
        scratch_shapes = []

    kernel = functools.partial(_loss_kernel, k=K, nv=Nv, m_pad=M_pad,
                               fused_gather=fused_gather)
    partials = pl.pallas_call(
        kernel,
        out_shape=jax.ShapeDtypeStruct((nb, 8, 128), jnp.float32),
        grid=(nb,),
        in_specs=[xy_spec,
                  pl.BlockSpec((tb, M_pad), lambda ib: (ib, 0)),
                  pl.BlockSpec((1, M_pad), lambda ib: (0, 0)),
                  pl.BlockSpec((1, M_pad), lambda ib: (0, 0))],
        out_specs=pl.BlockSpec((1, 8, 128), lambda ib: (ib, 0, 0)),
        scratch_shapes=scratch_shapes,
        compiler_params=pltpu.CompilerParams(
            dimension_semantics=("parallel",),
            vmem_limit_bytes=32 * 1024 * 1024),
    )(xy_in, a_flat, ind2d, w2d)

    denom = jnp.float32(2 * B * (Nv - 1))
    return jnp.sum(partials[:, 0, 0]) / denom


def loss_func(pred, A, org_ind, bound_num):
    """Pallas TPU implementation of DBSnet LossFunc.forward."""
    try:
        out = _loss_impl(pred, A, org_ind, bound_num=bound_num,
                         fused_gather=True)
        return jax.block_until_ready(out)
    except Exception:
        # The fused path needs Mosaic's dynamic_gather lowering; if this
        # jax/libtpu version rejects it, fall back to a wrapper-side gather
        # (same kernel math, A still streamed exactly once).
        out = _loss_impl(pred, A, org_ind, bound_num=bound_num,
                         fused_gather=False)
        return jax.block_until_ready(out)


def loss_ref(pred, A, org_ind, bound_num):
    # Pure-JAX reference mirroring the PyTorch forward exactly.
    B, _, Nv = pred.shape
    A = A.at[:, math.floor(bound_num / 2), :].set(0.0)
    x = pred[:, 0, :]
    y = pred[:, 1, :]
    ind = org_ind.reshape(-1)
    new_x = x[:, ind].reshape(B, Nv, A.shape[2])
    new_y = y[:, ind].reshape(B, Nv, A.shape[2])
    bx = jnp.sum((A * new_x)[:, 1:, :], axis=2)
    by = jnp.sum((A * new_y)[:, 1:, :], axis=2)
    return jnp.mean(jnp.abs(jnp.stack((bx, by))))


if __name__ == "__main__":
    B, Nv, K = 2, 16, 8
    bound_num = 6  # -> row 3 of A is zeroed

    key = jax.random.PRNGKey(0)
    k1, k2, k3 = jax.random.split(key, 3)
    pred = jax.random.normal(k1, (B, 2, Nv), dtype=jnp.float32)
    A = jax.random.normal(k2, (B, Nv, K), dtype=jnp.float32)
    org_ind = jax.random.randint(k3, (Nv, K), 0, Nv, dtype=jnp.int32)

    out = loss_func(pred, A, org_ind, bound_num)
    out = jax.block_until_ready(out)

    ref = loss_ref(pred, A, org_ind, bound_num)
    assert jnp.allclose(out, ref, rtol=1e-5, atol=1e-6), (out, ref)
    print("KERNEL_OK")
</pallas_src>

<mosaic_0001>
module attributes {stable_mosaic.version = 11 : i64} {
  func.func @_loss_kernel(%arg0: i32, %arg1: memref<2x2x16xf32, #tpu.memory_space<vmem>>, %arg2: memref<2x128xf32, #tpu.memory_space<vmem>>, %arg3: memref<1x128xi32, #tpu.memory_space<vmem>>, %arg4: memref<1x128xf32, #tpu.memory_space<vmem>>, %arg5: memref<1x8x128xf32, #tpu.memory_space<vmem>>, %arg6: memref<2x128xf32, #tpu.memory_space<vmem>>) attributes {dimension_semantics = [#tpu.dimension_semantics<parallel>], iteration_bounds = array<i64: 1>, scalar_prefetch = 0 : i64, scratch_operands = 1 : i64, tpu.core_type = #tpu.core_type<tc>, window_params = [{transform_indices = @transform_0, window_bounds = array<i64: 2, 2, 16>}, {transform_indices = @transform_1, window_bounds = array<i64: 2, 128>}, {pipeline_mode = #tpu.pipeline_mode<synchronous>, transform_indices = @transform_2, window_bounds = array<i64: 1, 128>}, {pipeline_mode = #tpu.pipeline_mode<synchronous>, transform_indices = @transform_3, window_bounds = array<i64: 1, 128>}, {transform_indices = @transform_4, window_bounds = array<i64: 1, 8, 128>}]} {
    %c0 = arith.constant 0 : index
    %c0_0 = arith.constant 0 : index
    %0 = vector.load %arg2[%c0, %c0_0] : memref<2x128xf32, #tpu.memory_space<vmem>>, vector<2x128xf32>
    %c0_1 = arith.constant 0 : index
    %c0_2 = arith.constant 0 : index
    %1 = vector.load %arg4[%c0_1, %c0_2] : memref<1x128xf32, #tpu.memory_space<vmem>>, vector<1x128xf32>
    %c0_3 = arith.constant 0 : index
    %c0_4 = arith.constant 0 : index
    %2 = vector.load %arg3[%c0_3, %c0_4] : memref<1x128xi32, #tpu.memory_space<vmem>>, vector<1x128xi32>
    %3 = vector.shape_cast %2 : vector<1x128xi32> to vector<1x128xi32>
    %4 = vector.broadcast %3 : vector<1x128xi32> to vector<2x128xi32>
    %cst = arith.constant 0.000000e+00 : f32
    %5 = vector.broadcast %cst : f32 to vector<2x128xf32>
    %c0_5 = arith.constant 0 : index
    %c0_6 = arith.constant 0 : index
    %6 = vector.load %arg6[%c0_5, %c0_6] : memref<2x128xf32, #tpu.memory_space<vmem>>, vector<2x128xf32>
    tpu.vector_store %arg6[%c0_5, %c0_6], %5 {strides = array<i32>} : memref<2x128xf32, #tpu.memory_space<vmem>>, vector<2x128xf32>,
    %c0_7 = arith.constant 0 : index
    %c0_8 = arith.constant 0 : index
    %c0_9 = arith.constant 0 : index
    %7 = vector.load %arg1[%c0_7, %c0_8, %c0_9] : memref<2x2x16xf32, #tpu.memory_space<vmem>>, vector<1x2x16xf32>
    %8 = vector.shape_cast %7 : vector<1x2x16xf32> to vector<2x16xf32>
    %c0_10 = arith.constant 0 : index
    %c0_11 = arith.constant 0 : index
    %9 = vector.load %arg6[%c0_10, %c0_11] : memref<2x128xf32, #tpu.memory_space<vmem>>, vector<2x16xf32>
    tpu.vector_store %arg6[%c0_10, %c0_11], %8 {strides = array<i32>} : memref<2x128xf32, #tpu.memory_space<vmem>>, vector<2x16xf32>,
    %c0_12 = arith.constant 0 : index
    %c0_13 = arith.constant 0 : index
    %10 = vector.load %arg6[%c0_12, %c0_13] : memref<2x128xf32, #tpu.memory_space<vmem>>, vector<2x128xf32>
    %11 = vector.shape_cast %4 : vector<2x128xi32> to vector<2x128x1xi32>
    %12 = vector.shape_cast %11 : vector<2x128x1xi32> to vector<2x128xi32>
    %13 = tpu.dynamic_gather %10[%12] in [1] : vector<2x128xf32>, vector<2x128xi32> -> vector<2x128xf32>
    %14 = arith.mulf %0, %13 : vector<2x128xf32>
    %c1_i32 = arith.constant 1 : i32
    %15 = tpu.dynamic_rotate %14 by %c1_i32 dim 1 : vector<2x128xf32>, i32 -> vector<2x128xf32>
    %16 = arith.addf %14, %15 : vector<2x128xf32>
    %c2_i32 = arith.constant 2 : i32
    %17 = tpu.dynamic_rotate %16 by %c2_i32 dim 1 : vector<2x128xf32>, i32 -> vector<2x128xf32>
    %18 = arith.addf %16, %17 : vector<2x128xf32>
    %c4_i32 = arith.constant 4 : i32
    %19 = tpu.dynamic_rotate %18 by %c4_i32 dim 1 : vector<2x128xf32>, i32 -> vector<2x128xf32>
    %20 = arith.addf %18, %19 : vector<2x128xf32>
    %21 = math.absf %20 : vector<2x128xf32>
    %22 = vector.broadcast %1 : vector<1x128xf32> to vector<2x128xf32>
    %23 = arith.mulf %22, %21 : vector<2x128xf32>
    %24 = vector.shape_cast %23 : vector<2x128xf32> to vector<1x2x128xf32>
    %cst_14 = arith.constant dense<0.000000e+00> : vector<1xf32>
    %25 = vector.multi_reduction <add>, %24, %cst_14 [1, 2] : vector<1x2x128xf32> to vector<1xf32>
    %26 = vector.shape_cast %25 : vector<1xf32> to vector<1x1x1xf32>
    %27 = vector.extract %26[0, 0, 0] : f32 from vector<1x1x1xf32>
    %cst_15 = arith.constant 0.000000e+00 : f32
    %28 = arith.addf %cst_15, %27 : f32
    %c1 = arith.constant 1 : index
    %c0_16 = arith.constant 0 : index
    %c0_17 = arith.constant 0 : index
    %29 = vector.load %arg1[%c1, %c0_16, %c0_17] : memref<2x2x16xf32, #tpu.memory_space<vmem>>, vector<1x2x16xf32>
    %30 = vector.shape_cast %29 : vector<1x2x16xf32> to vector<2x16xf32>
    %c0_18 = arith.constant 0 : index
    %c0_19 = arith.constant 0 : index
    %31 = vector.load %arg6[%c0_18, %c0_19] : memref<2x128xf32, #tpu.memory_space<vmem>>, vector<2x16xf32>
    tpu.vector_store %arg6[%c0_18, %c0_19], %30 {strides = array<i32>} : memref<2x128xf32, #tpu.memory_space<vmem>>, vector<2x16xf32>,
    %c0_20 = arith.constant 0 : index
    %c0_21 = arith.constant 0 : index
    %32 = vector.load %arg6[%c0_20, %c0_21] : memref<2x128xf32, #tpu.memory_space<vmem>>, vector<2x128xf32>
    %33 = vector.shape_cast %4 : vector<2x128xi32> to vector<2x128x1xi32>
    %34 = vector.shape_cast %33 : vector<2x128x1xi32> to vector<2x128xi32>
    %35 = tpu.dynamic_gather %32[%34] in [1] : vector<2x128xf32>, vector<2x128xi32> -> vector<2x128xf32>
    %36 = arith.mulf %0, %35 : vector<2x128xf32>
    %c1_i32_22 = arith.constant 1 : i32
    %37 = tpu.dynamic_rotate %36 by %c1_i32_22 dim 1 : vector<2x128xf32>, i32 -> vector<2x128xf32>
    %38 = arith.addf %36, %37 : vector<2x128xf32>
    %c2_i32_23 = arith.constant 2 : i32
    %39 = tpu.dynamic_rotate %38 by %c2_i32_23 dim 1 : vector<2x128xf32>, i32 -> vector<2x128xf32>
    %40 = arith.addf %38, %39 : vector<2x128xf32>
    %c4_i32_24 = arith.constant 4 : i32
    %41 = tpu.dynamic_rotate %40 by %c4_i32_24 dim 1 : vector<2x128xf32>, i32 -> vector<2x128xf32>
    %42 = arith.addf %40, %41 : vector<2x128xf32>
    %43 = math.absf %42 : vector<2x128xf32>
    %44 = vector.broadcast %1 : vector<1x128xf32> to vector<2x128xf32>
    %45 = arith.mulf %44, %43 : vector<2x128xf32>
    %46 = vector.shape_cast %45 : vector<2x128xf32> to vector<1x2x128xf32>
    %cst_25 = arith.constant dense<0.000000e+00> : vector<1xf32>
    %47 = vector.multi_reduction <add>, %46, %cst_25 [1, 2] : vector<1x2x128xf32> to vector<1xf32>
    %48 = vector.shape_cast %47 : vector<1xf32> to vector<1x1x1xf32>
    %49 = vector.extract %48[0, 0, 0] : f32 from vector<1x1x1xf32>
    %50 = arith.addf %28, %49 : f32
    %51 = vector.broadcast %50 : f32 to vector<1x8x128xf32>
    %c0_26 = arith.constant 0 : index
    %c0_27 = arith.constant 0 : index
    %c0_28 = arith.constant 0 : index
    %52 = vector.load %arg5[%c0_26, %c0_27, %c0_28] : memref<1x8x128xf32, #tpu.memory_space<vmem>>, vector<1x8x128xf32>
    tpu.vector_store %arg5[%c0_26, %c0_27, %c0_28], %51 {strides = array<i32>} : memref<1x8x128xf32, #tpu.memory_space<vmem>>, vector<1x8x128xf32>,
    return
  }
  func.func @transform_0(%arg0: i32) -> (i32, i32, i32) {
    %c0_i32 = arith.constant 0 : i32
    %c0_i32_0 = arith.constant 0 : i32
    %c0_i32_1 = arith.constant 0 : i32
    return %c0_i32, %arg0, %c0_i32_0 : i32, i32, i32
  }
  func.func @transform_1(%arg0: i32) -> (i32, i32) {
    %c0_i32 = arith.constant 0 : i32
    %c0_i32_0 = arith.constant 0 : i32
    return %arg0, %c0_i32 : i32, i32
  }
  func.func @transform_2(%arg0: i32) -> (i32, i32) {
    %c0_i32 = arith.constant 0 : i32
    %c0_i32_0 = arith.constant 0 : i32
    %c0_i32_1 = arith.constant 0 : i32
    return %c0_i32, %c0_i32_0 : i32, i32
  }
  func.func @transform_3(%arg0: i32) -> (i32, i32) {
    %c0_i32 = arith.constant 0 : i32
    %c0_i32_0 = arith.constant 0 : i32
    %c0_i32_1 = arith.constant 0 : i32
    return %c0_i32, %c0_i32_0 : i32, i32
  }
  func.func @transform_4(%arg0: i32) -> (i32, i32, i32) {
    %c0_i32 = arith.constant 0 : i32
    %c0_i32_0 = arith.constant 0 : i32
    %c0_i32_1 = arith.constant 0 : i32
    return %arg0, %c0_i32, %c0_i32_0 : i32, i32, i32
  }
}

module attributes {stable_mosaic.version = 11 : i64} {
  func.func @_loss_kernel(%arg0: i32, %arg1: memref<2x2x128xf32, #tpu.memory_space<vmem>>, %arg2: memref<2x128xf32, #tpu.memory_space<vmem>>, %arg3: memref<1x128xi32, #tpu.memory_space<vmem>>, %arg4: memref<1x128xf32, #tpu.memory_space<vmem>>, %arg5: memref<1x8x128xf32, #tpu.memory_space<vmem>>) attributes {dimension_semantics = [#tpu.dimension_semantics<parallel>], iteration_bounds = array<i64: 1>, scalar_prefetch = 0 : i64, scratch_operands = 0 : i64, tpu.core_type = #tpu.core_type<tc>, window_params = [{transform_indices = @transform_0, window_bounds = array<i64: 2, 2, 128>}, {transform_indices = @transform_1, window_bounds = array<i64: 2, 128>}, {pipeline_mode = #tpu.pipeline_mode<synchronous>, transform_indices = @transform_2, window_bounds = array<i64: 1, 128>}, {pipeline_mode = #tpu.pipeline_mode<synchronous>, transform_indices = @transform_3, window_bounds = array<i64: 1, 128>}, {transform_indices = @transform_4, window_bounds = array<i64: 1, 8, 128>}]} {
    %c0 = arith.constant 0 : index
    %c0_0 = arith.constant 0 : index
    %0 = vector.load %arg2[%c0, %c0_0] : memref<2x128xf32, #tpu.memory_space<vmem>>, vector<2x128xf32>
    %c0_1 = arith.constant 0 : index
    %c0_2 = arith.constant 0 : index
    %1 = vector.load %arg4[%c0_1, %c0_2] : memref<1x128xf32, #tpu.memory_space<vmem>>, vector<1x128xf32>
    %c0_3 = arith.constant 0 : index
    %c0_4 = arith.constant 0 : index
    %c0_5 = arith.constant 0 : index
    %2 = vector.load %arg1[%c0_3, %c0_4, %c0_5] : memref<2x2x128xf32, #tpu.memory_space<vmem>>, vector<1x2x128xf32>
    %3 = vector.shape_cast %2 : vector<1x2x128xf32> to vector<2x128xf32>
    %4 = arith.mulf %0, %3 : vector<2x128xf32>
    %c1_i32 = arith.constant 1 : i32
    %5 = tpu.dynamic_rotate %4 by %c1_i32 dim 1 : vector<2x128xf32>, i32 -> vector<2x128xf32>
    %6 = arith.addf %4, %5 : vector<2x128xf32>
    %c2_i32 = arith.constant 2 : i32
    %7 = tpu.dynamic_rotate %6 by %c2_i32 dim 1 : vector<2x128xf32>, i32 -> vector<2x128xf32>
    %8 = arith.addf %6, %7 : vector<2x128xf32>
    %c4_i32 = arith.constant 4 : i32
    %9 = tpu.dynamic_rotate %8 by %c4_i32 dim 1 : vector<2x128xf32>, i32 -> vector<2x128xf32>
    %10 = arith.addf %8, %9 : vector<2x128xf32>
    %11 = math.absf %10 : vector<2x128xf32>
    %12 = vector.broadcast %1 : vector<1x128xf32> to vector<2x128xf32>
    %13 = arith.mulf %12, %11 : vector<2x128xf32>
    %14 = vector.shape_cast %13 : vector<2x128xf32> to vector<1x2x128xf32>
    %cst = arith.constant dense<0.000000e+00> : vector<1xf32>
    %15 = vector.multi_reduction <add>, %14, %cst [1, 2] : vector<1x2x128xf32> to vector<1xf32>
    %16 = vector.shape_cast %15 : vector<1xf32> to vector<1x1x1xf32>
    %17 = vector.extract %16[0, 0, 0] : f32 from vector<1x1x1xf32>
    %cst_6 = arith.constant 0.000000e+00 : f32
    %18 = arith.addf %cst_6, %17 : f32
    %c1 = arith.constant 1 : index
    %c0_7 = arith.constant 0 : index
    %c0_8 = arith.constant 0 : index
    %19 = vector.load %arg1[%c1, %c0_7, %c0_8] : memref<2x2x128xf32, #tpu.memory_space<vmem>>, vector<1x2x128xf32>
    %20 = vector.shape_cast %19 : vector<1x2x128xf32> to vector<2x128xf32>
    %21 = arith.mulf %0, %20 : vector<2x128xf32>
    %c1_i32_9 = arith.constant 1 : i32
    %22 = tpu.dynamic_rotate %21 by %c1_i32_9 dim 1 : vector<2x128xf32>, i32 -> vector<2x128xf32>
    %23 = arith.addf %21, %22 : vector<2x128xf32>
    %c2_i32_10 = arith.constant 2 : i32
    %24 = tpu.dynamic_rotate %23 by %c2_i32_10 dim 1 : vector<2x128xf32>, i32 -> vector<2x128xf32>
    %25 = arith.addf %23, %24 : vector<2x128xf32>
    %c4_i32_11 = arith.constant 4 : i32
    %26 = tpu.dynamic_rotate %25 by %c4_i32_11 dim 1 : vector<2x128xf32>, i32 -> vector<2x128xf32>
    %27 = arith.addf %25, %26 : vector<2x128xf32>
    %28 = math.absf %27 : vector<2x128xf32>
    %29 = vector.broadcast %1 : vector<1x128xf32> to vector<2x128xf32>
    %30 = arith.mulf %29, %28 : vector<2x128xf32>
    %31 = vector.shape_cast %30 : vector<2x128xf32> to vector<1x2x128xf32>
    %cst_12 = arith.constant dense<0.000000e+00> : vector<1xf32>
    %32 = vector.multi_reduction <add>, %31, %cst_12 [1, 2] : vector<1x2x128xf32> to vector<1xf32>
    %33 = vector.shape_cast %32 : vector<1xf32> to vector<1x1x1xf32>
    %34 = vector.extract %33[0, 0, 0] : f32 from vector<1x1x1xf32>
    %35 = arith.addf %18, %34 : f32
    %36 = vector.broadcast %35 : f32 to vector<1x8x128xf32>
    %c0_13 = arith.constant 0 : index
    %c0_14 = arith.constant 0 : index
    %c0_15 = arith.constant 0 : index
    %37 = vector.load %arg5[%c0_13, %c0_14, %c0_15] : memref<1x8x128xf32, #tpu.memory_space<vmem>>, vector<1x8x128xf32>
    tpu.vector_store %arg5[%c0_13, %c0_14, %c0_15], %36 {strides = array<i32>} : memref<1x8x128xf32, #tpu.memory_space<vmem>>, vector<1x8x128xf32>,
    return
  }
  func.func @transform_0(%arg0: i32) -> (i32, i32, i32) {
    %c0_i32 = arith.constant 0 : i32
    %c0_i32_0 = arith.constant 0 : i32
    %c0_i32_1 = arith.constant 0 : i32
    return %c0_i32, %arg0, %c0_i32_0 : i32, i32, i32
  }
  func.func @transform_1(%arg0: i32) -> (i32, i32) {
    %c0_i32 = arith.constant 0 : i32
    %c0_i32_0 = arith.constant 0 : i32
    return %arg0, %c0_i32 : i32, i32
  }
  func.func @transform_2(%arg0: i32) -> (i32, i32) {
    %c0_i32 = arith.constant 0 : i32
    %c0_i32_0 = arith.constant 0 : i32
    %c0_i32_1 = arith.constant 0 : i32
    return %c0_i32, %c0_i32_0 : i32, i32
  }
  func.func @transform_3(%arg0: i32) -> (i32, i32) {
    %c0_i32 = arith.constant 0 : i32
    %c0_i32_0 = arith.constant 0 : i32
    %c0_i32_1 = arith.constant 0 : i32
    return %c0_i32, %c0_i32_0 : i32, i32
  }
  func.func @transform_4(%arg0: i32) -> (i32, i32, i32) {
    %c0_i32 = arith.constant 0 : i32
    %c0_i32_0 = arith.constant 0 : i32
    %c0_i32_1 = arith.constant 0 : i32
    return %arg0, %c0_i32, %c0_i32_0 : i32, i32, i32
  }
}

</mosaic_0001>

<llo_original>
// kernel: _loss_impl.1
$region0: #{_loss_impl.1}
  #allocation0 [shape = 'u32[]', space=smem, size = 0x4, offset = 0x4, fixed_abs, tag = 'smem constant byte address 0x4 - core index']
  #allocation1 [shape = 'u32[72,128]{1,0:T(1,128)}', space=vmem, size = 0x9000, scoped, tag = 'internal scratch']
  #allocation2 [shape = 'f32[2,128]{1,0:T(2,128)}', space=vmem, size = 0x400, scoped, tag = 'scratch operand']
  %s0 = inlined_call_operand.vmem [shape: f32[2,2,16], index: 0, kind: input, shape index: {}]
  %s1 = inlined_call_operand.vmem [shape: f32[2,128], index: 1, kind: input, shape index: {}]
  %s2 = inlined_call_operand.vmem [shape: s32[1,128], index: 2, kind: input, shape index: {}]
  %s3 = inlined_call_operand.vmem [shape: f32[1,128], index: 3, kind: input, shape index: {}]
  %s4 = inlined_call_operand.vmem [shape: f32[1,8,128], index: 4, kind: output, shape index: {}]
  %s5 = sld [smem:[#allocation0]]
  $region26: #{_loss_impl.1} parent=0
    _
  %s7 = ssub.s32 1, %s5
  %s8 = scalar_select 0, %s7, %s5
  // Predicated region
  $region2: #{_loss_impl.1} parent=0 // pred_check
    _
  $region3: #{_loss_impl.1} parent=0 // pred_check_branch
    %10 = sbr.rel (0) target = $region5
  $region4: #{_loss_impl.1} parent=0 // pred_region
    _
  $region5: #{_loss_impl.1} parent=0 // pred_fallthru
    _
  // Predicated region
  $region6: #{_loss_impl.1} parent=0 // pred_check
    _
  $region7: #{_loss_impl.1} parent=0 // pred_check_branch
    %12 = sbr.rel (0) target = $region9
  $region8: #{_loss_impl.1} parent=0 // pred_region
    _
  $region9: #{_loss_impl.1} parent=0 // pred_fallthru
    _
  // Predicated region
  $region10: #{_loss_impl.1} parent=0 // pred_check
    _
  $region11: #{_loss_impl.1} parent=0 // pred_check_branch
    %14 = sbr.rel (0) target = $region13
  $region12: #{_loss_impl.1} parent=0 // pred_region
    _
  $region13: #{_loss_impl.1} parent=0 // pred_fallthru
    _
  // Predicated region
  $region14: #{_loss_impl.1} parent=0 // pred_check
    _
  $region15: #{_loss_impl.1} parent=0 // pred_check_branch
    %16 = sbr.rel (0) target = $region17
  $region16: #{_loss_impl.1} parent=0 // pred_region
    _
  $region17: #{_loss_impl.1} parent=0 // pred_fallthru
    _
  %v17 = vld [vmem:[%s1] sm:$0x3]
  %v18 = vld [vmem:[%s3] sm:$0x1]
  %v19 = vld [vmem:[%s2] sm:$0x1]
  %v20 = vperm.slane %v19, 0
  %21 = vst [vmem:[#allocation2] sm:$0x3] 0.0
  %v22 = vld [vmem:[%s0] sm:$0x3]
  %vm23 = vcmask 123904
  %24 = vst.msk [vmem:[#allocation2] sm:$0x3] %vm23, %v22
  %v25 = vld [vmem:[#allocation2] sm:$0x3]
  %26 = vset.pattern.permute.xlu0 %v20
  %27 = vperm.xlu0 %26, %v25
  %v28 = vpop.permute.xlu0 %27
  %v29 = vmul.f32 %v17, %v28
  %30 = vrot.lane.b32.xlu0 %v29, 1
  %v31 = vpop.permute.xlu0 %30
  %v32 = vadd.f32 %v29, %v31
  %33 = vrot.lane.b32.xlu0 %v32, 2
  %v34 = vpop.permute.xlu0 %33
  %v35 = vadd.f32 %v32, %v34
  %36 = vrot.lane.b32.xlu0 %v35, 4
  %v37 = vpop.permute.xlu0 %36
  %v38 = vadd.f32 %v35, %v37
  %v39 = vand.u32 2147483647, %v38
  %v41 = vperm.slane %v18, 0
  %v43 = vmul.f32 %v41, %v39
  %vm44 = vcmask 1041408
  %v45 = vsel %vm44, %v43, 0.0
  %46 = vadd.xlane.f32.xlu0 %v45
  %v47 = vpop.xlane.xlu0 %46
  %v48 = vrot.slane %v47, 4
  %v49 = vadd.f32 %v47, %v48
  %v50 = vrot.slane %v49, 2
  %v51 = vadd.f32 %v49, %v50
  %v52 = vrot.slane %v51, 1
  %v53 = vadd.f32 %v51, %v52
  %s54 = vtos %v53
  %s55 = sadd.f32 %s54, 0.0
  %s56 = scalar_lea.vmem %s0, 2
  %v57 = vld [vmem:[%s56] sm:$0x3]
  %58 = vst.msk [vmem:[#allocation2] sm:$0x3] %vm23, %v57
  %v59 = vld [vmem:[#allocation2] sm:$0x3]
  %60 = vset.pattern.permute.xlu0 %v20
  %61 = vperm.xlu0 %60, %v59
  %v62 = vpop.permute.xlu0 %61
  %v63 = vmul.f32 %v17, %v62
  %64 = vrot.lane.b32.xlu0 %v63, 1
  %v65 = vpop.permute.xlu0 %64
  %v66 = vadd.f32 %v63, %v65
  %67 = vrot.lane.b32.xlu0 %v66, 2
  %v68 = vpop.permute.xlu0 %67
  %v69 = vadd.f32 %v66, %v68
  %70 = vrot.lane.b32.xlu0 %v69, 4
  %v71 = vpop.permute.xlu0 %70
  %v72 = vadd.f32 %v69, %v71
  %v73 = vand.u32 2147483647, %v72
  %v74 = vmul.f32 %v41, %v73
  %v75 = vsel %vm44, %v74, 0.0
  %76 = vadd.xlane.f32.xlu0 %v75
  %v77 = vpop.xlane.xlu0 %76
  %v78 = vrot.slane %v77, 4
  %v79 = vadd.f32 %v77, %v78
  %v80 = vrot.slane %v79, 2
  %v81 = vadd.f32 %v79, %v80
  %v82 = vrot.slane %v81, 1
  %v83 = vadd.f32 %v81, %v82
  %s84 = vtos %v83
  %s85 = sadd.f32 %s55, %s84
  %v86 = vstv %s85
  %87 = vst [vmem:[%s4] sm:$0xff] %v86
  // Predicated region
  $region18: #{_loss_impl.1} parent=0 // pred_check
    _
  $region19: #{_loss_impl.1} parent=0 // pred_check_branch
    %89 = sbr.rel (0) target = $region21
  $region20: #{_loss_impl.1} parent=0 // pred_region
    _
  $region21: #{_loss_impl.1} parent=0 // pred_fallthru
    _
  // Predicated region
  $region22: #{_loss_impl.1} parent=0 // pred_check
    _
  $region23: #{_loss_impl.1} parent=0 // pred_check_branch
    %91 = sbr.rel (0) target = $region25
  $region24: #{_loss_impl.1} parent=0 // pred_region
    _
  $region25: #{_loss_impl.1} parent=0 // pred_fallthru
    _

// kernel: _loss_impl.1
$region0: #{_loss_impl.1}
  #allocation0 [shape = 'u32[]', space=smem, size = 0x4, offset = 0x4, fixed_abs, tag = 'smem constant byte address 0x4 - core index']
  #allocation1 [shape = 'u32[72,128]{1,0:T(1,128)}', space=vmem, size = 0x9000, scoped, tag = 'internal scratch']
  %s0 = inlined_call_operand.vmem [shape: f32[2,2,128], index: 0, kind: input, shape index: {}]
  %s1 = inlined_call_operand.vmem [shape: f32[2,128], index: 1, kind: input, shape index: {}]
  %s2 = inlined_call_operand.vmem [shape: s32[1,128], index: 2, kind: input, shape index: {}]
  %s3 = inlined_call_operand.vmem [shape: f32[1,128], index: 3, kind: input, shape index: {}]
  %s4 = inlined_call_operand.vmem [shape: f32[1,8,128], index: 4, kind: output, shape index: {}]
  %s5 = sld [smem:[#allocation0]]
  $region26: #{_loss_impl.1} parent=0
    _
  %s7 = ssub.s32 1, %s5
  %s8 = scalar_select 0, %s7, %s5
  // Predicated region
  $region2: #{_loss_impl.1} parent=0 // pred_check
    _
  $region3: #{_loss_impl.1} parent=0 // pred_check_branch
    %10 = sbr.rel (0) target = $region5
  $region4: #{_loss_impl.1} parent=0 // pred_region
    _
  $region5: #{_loss_impl.1} parent=0 // pred_fallthru
    _
  // Predicated region
  $region6: #{_loss_impl.1} parent=0 // pred_check
    _
  $region7: #{_loss_impl.1} parent=0 // pred_check_branch
    %12 = sbr.rel (0) target = $region9
  $region8: #{_loss_impl.1} parent=0 // pred_region
    _
  $region9: #{_loss_impl.1} parent=0 // pred_fallthru
    _
  // Predicated region
  $region10: #{_loss_impl.1} parent=0 // pred_check
    _
  $region11: #{_loss_impl.1} parent=0 // pred_check_branch
    %14 = sbr.rel (0) target = $region13
  $region12: #{_loss_impl.1} parent=0 // pred_region
    _
  $region13: #{_loss_impl.1} parent=0 // pred_fallthru
    _
  // Predicated region
  $region14: #{_loss_impl.1} parent=0 // pred_check
    _
  $region15: #{_loss_impl.1} parent=0 // pred_check_branch
    %16 = sbr.rel (0) target = $region17
  $region16: #{_loss_impl.1} parent=0 // pred_region
    _
  $region17: #{_loss_impl.1} parent=0 // pred_fallthru
    _
  %v17 = vld [vmem:[%s1] sm:$0x3]
  %v18 = vld [vmem:[%s3] sm:$0x1]
  %v19 = vld [vmem:[%s0] sm:$0x3]
  %v20 = vmul.f32 %v17, %v19
  %21 = vrot.lane.b32.xlu0 %v20, 1
  %v22 = vpop.permute.xlu0 %21
  %v23 = vadd.f32 %v20, %v22
  %24 = vrot.lane.b32.xlu0 %v23, 2
  %v25 = vpop.permute.xlu0 %24
  %v26 = vadd.f32 %v23, %v25
  %27 = vrot.lane.b32.xlu0 %v26, 4
  %v28 = vpop.permute.xlu0 %27
  %v29 = vadd.f32 %v26, %v28
  %v30 = vand.u32 2147483647, %v29
  %v32 = vperm.slane %v18, 0
  %v34 = vmul.f32 %v32, %v30
  %vm35 = vcmask 1041408
  %v36 = vsel %vm35, %v34, 0.0
  %37 = vadd.xlane.f32.xlu0 %v36
  %v38 = vpop.xlane.xlu0 %37
  %v39 = vrot.slane %v38, 4
  %v40 = vadd.f32 %v38, %v39
  %v41 = vrot.slane %v40, 2
  %v42 = vadd.f32 %v40, %v41
  %v43 = vrot.slane %v42, 1
  %v44 = vadd.f32 %v42, %v43
  %s45 = vtos %v44
  %s46 = sadd.f32 %s45, 0.0
  %s47 = scalar_lea.vmem %s0, 2
  %v48 = vld [vmem:[%s47] sm:$0x3]
  %v49 = vmul.f32 %v17, %v48
  %50 = vrot.lane.b32.xlu0 %v49, 1
  %v51 = vpop.permute.xlu0 %50
  %v52 = vadd.f32 %v49, %v51
  %53 = vrot.lane.b32.xlu0 %v52, 2
  %v54 = vpop.permute.xlu0 %53
  %v55 = vadd.f32 %v52, %v54
  %56 = vrot.lane.b32.xlu0 %v55, 4
  %v57 = vpop.permute.xlu0 %56
  %v58 = vadd.f32 %v55, %v57
  %v59 = vand.u32 2147483647, %v58
  %v60 = vmul.f32 %v32, %v59
  %v61 = vsel %vm35, %v60, 0.0
  %62 = vadd.xlane.f32.xlu0 %v61
  %v63 = vpop.xlane.xlu0 %62
  %v64 = vrot.slane %v63, 4
  %v65 = vadd.f32 %v63, %v64
  %v66 = vrot.slane %v65, 2
  %v67 = vadd.f32 %v65, %v66
  %v68 = vrot.slane %v67, 1
  %v69 = vadd.f32 %v67, %v68
  %s70 = vtos %v69
  %s71 = sadd.f32 %s46, %s70
  %v72 = vstv %s71
  %73 = vst [vmem:[%s4] sm:$0xff] %v72
  // Predicated region
  $region18: #{_loss_impl.1} parent=0 // pred_check
    _
  $region19: #{_loss_impl.1} parent=0 // pred_check_branch
    %75 = sbr.rel (0) target = $region21
  $region20: #{_loss_impl.1} parent=0 // pred_region
    _
  $region21: #{_loss_impl.1} parent=0 // pred_fallthru
    _
  // Predicated region
  $region22: #{_loss_impl.1} parent=0 // pred_check
    _
  $region23: #{_loss_impl.1} parent=0 // pred_check_branch
    %77 = sbr.rel (0) target = $region25
  $region24: #{_loss_impl.1} parent=0 // pred_region
    _
  $region25: #{_loss_impl.1} parent=0 // pred_fallthru
    _

</llo_original>
